<compile_context>
chip_gen: v7x
topology: tpu7x:2x2x1
jax: 0.10.0
libtpu: 0.0.40
codegen_flags: <defaults>
</compile_context>

<pallas_src>
import functools

import jax
import jax.numpy as jnp
from jax.experimental import pallas as pl
from jax.experimental.pallas import tpu as pltpu

_LANE = 128
_SUBLANE = 8


def _partial_sums_kernel(x_ref, t_ref, o_ref, *, rows, tile_rows, need_mask):
    """Per-block lane-wise partials: row0 = sum(x*t, axis=0), row1 = sum(x+t, axis=0)."""

    def emit(x, t):
        o_ref[0, 0:1, :] = jnp.sum(x * t, axis=0, keepdims=True)
        o_ref[0, 1:2, :] = jnp.sum(x + t, axis=0, keepdims=True)

    if not need_mask:
        emit(x_ref[...].astype(jnp.float32), t_ref[...].astype(jnp.float32))
    else:
        i = pl.program_id(0)
        last = pl.num_programs(0) - 1

        @pl.when(i != last)
        def _():
            # Fast path: full tile, no iota / selects.
            emit(x_ref[...].astype(jnp.float32), t_ref[...].astype(jnp.float32))

        @pl.when(i == last)
        def _():
            # The last block reads past `rows` (undefined data); mask BEFORE the
            # multiply so garbage (even NaN/Inf) cannot propagate into the sums.
            x = x_ref[...].astype(jnp.float32)
            t = t_ref[...].astype(jnp.float32)
            row_ids = (
                jax.lax.broadcasted_iota(jnp.int32, (tile_rows, 1), 0)
                + i * tile_rows
            )
            valid = row_ids < rows
            x = jnp.where(valid, x, 0.0)
            t = jnp.where(valid, t, 0.0)
            emit(x, t)


def log_cosh_dice_loss(inputs, targets, smooth=1e-05, *,
                       tile_rows=None, vmem_limit_bytes=None):
    """Pallas TPU implementation of LogCoshDiceLoss.forward. Returns scalar f32."""
    x = jnp.ravel(inputs)   # keep native dtype; kernel casts per tile
    t = jnp.ravel(targets)
    n = x.shape[0]
    smooth = jnp.float32(smooth)

    itemsize = max(jnp.dtype(x.dtype).itemsize, jnp.dtype(t.dtype).itemsize)

    rows = n // _LANE
    n_main = rows * _LANE

    # Ragged tail (<128 elements): fold into the epilogue instead of jnp.pad-ing
    # both full arrays (which materialized a full HBM read+write of everything).
    # TODO(synk): the prefix slice below may still materialize a copy for ragged
    # n; a fully copy-free path would need a manual 1-D DMA of the tail.
    tail_inter = jnp.float32(0.0)
    tail_sxt = jnp.float32(0.0)
    if n_main < n:
        xt = x[n_main:].astype(jnp.float32)
        tt = t[n_main:].astype(jnp.float32)
        tail_inter = jnp.sum(xt * tt)
        tail_sxt = jnp.sum(xt + tt)
        x = x[:n_main]
        t = t[:n_main]

    if rows == 0:
        # Everything fit in the tail; nothing for the kernel to do.
        inter = tail_inter
        sxt = tail_sxt
    else:
        x2 = x.reshape(rows, _LANE)   # contiguous row-major -> bitcast
        t2 = t.reshape(rows, _LANE)

        # ---- Tile selection --------------------------------------------------
        if tile_rows is None:
            # ~2 MiB of input per operand per tile: 4096 rows f32, 8192 bf16.
            tile_rows = (2 * 1024 * 1024) // (itemsize * _LANE)
        tile_rows = max(_SUBLANE, (int(tile_rows) // _SUBLANE) * _SUBLANE)

        # Clamp the double-buffered footprint (2 inputs x 2 buffers x tile) to a
        # budget that fits the smallest scoped-VMEM default (v5e: 16 MiB) unless
        # the caller raises vmem_limit_bytes.
        budget = vmem_limit_bytes if vmem_limit_bytes is not None else 12 * 1024 * 1024
        max_tile_rows = max(
            _SUBLANE, (budget // (4 * _LANE * itemsize)) // _SUBLANE * _SUBLANE
        )
        tile_rows = min(tile_rows, max_tile_rows)

        if rows <= tile_rows:
            if rows >= 2 * _SUBLANE:
                # Keep >= 2 blocks so both v7x TensorCores / DMA paths get work.
                tile_rows = pl.cdiv(pl.cdiv(rows, 2), _SUBLANE) * _SUBLANE
            else:
                tile_rows = rows            # tiny input: one full-extent block
        num_blocks = pl.cdiv(rows, tile_rows)
        need_mask = (rows % tile_rows) != 0

        kernel = functools.partial(
            _partial_sums_kernel,
            rows=rows, tile_rows=tile_rows, need_mask=need_mask,
        )

        compiler_params = pltpu.CompilerParams(
            # Independent per-block partials -> grid can shard across both
            # TensorCores on v7x; neutral on single-TC v5e/v6e.
            # TODO(synk): if a v7x profile shows one idle TC, switch to
            # pltpu.CORE_PARALLEL / an explicit core_map split.
            dimension_semantics=("parallel",),
            vmem_limit_bytes=vmem_limit_bytes,
        )

        partials = pl.pallas_call(
            kernel,
            out_shape=jax.ShapeDtypeStruct((num_blocks, 2, _LANE), jnp.float32),
            grid_spec=pltpu.PrefetchScalarGridSpec(
                num_scalar_prefetch=0,
                grid=(num_blocks,),
                in_specs=[
                    pl.BlockSpec((tile_rows, _LANE), lambda i: (i, 0)),
                    pl.BlockSpec((tile_rows, _LANE), lambda i: (i, 0)),
                ],
                out_specs=pl.BlockSpec((1, 2, _LANE), lambda i: (i, 0, 0)),
            ),
            compiler_params=compiler_params,
        )(x2, t2)

        # Tiny epilogue: cross-lane / cross-block combine + tail contribution.
        inter = jnp.sum(partials[:, 0, :]) + tail_inter
        sxt = jnp.sum(partials[:, 1, :]) + tail_sxt

    dice = (2.0 * inter + smooth) / (sxt + smooth)
    return jnp.log(jnp.cosh(1.0 - dice))


def _reference(inputs, targets, smooth=1e-05):
    x = jnp.ravel(inputs).astype(jnp.float32)
    t = jnp.ravel(targets).astype(jnp.float32)
    inter = jnp.sum(x * t)
    dice = (2.0 * inter + smooth) / (jnp.sum(x) + jnp.sum(t) + smooth)
    return jnp.log(jnp.cosh(1.0 - dice))


if __name__ == "__main__":
    key = jax.random.PRNGKey(0)
    k1, k2, k3, k4, k5, k6 = jax.random.split(key, 6)

    # 1) Small NCHW-like segmentation shapes; n % 128 == 0, default tiling
    #    (auto-split into >= 2 blocks so a v7x dual-TC part stays busy).
    x = jax.nn.sigmoid(jax.random.normal(k1, (2, 4, 16, 16), dtype=jnp.float32))
    y = (jax.random.uniform(k2, (2, 4, 16, 16)) > 0.5).astype(jnp.float32)
    loss = jax.block_until_ready(log_cosh_dice_loss(x, y))
    ref = jax.block_until_ready(_reference(x, y))
    assert jnp.allclose(loss, ref, atol=1e-5, rtol=1e-5), (loss, ref)

    # 2) Ragged row count with a tiny explicit tile -> masked-last-block path.
    x2 = jax.nn.sigmoid(jax.random.normal(k3, (1, 1, 20, 128), dtype=jnp.float32))
    y2 = (jax.random.uniform(k4, (1, 1, 20, 128)) > 0.5).astype(jnp.float32)
    loss2 = jax.block_until_ready(log_cosh_dice_loss(x2, y2, tile_rows=8))
    ref2 = jax.block_until_ready(_reference(x2, y2))
    assert jnp.allclose(loss2, ref2, atol=1e-5, rtol=1e-5), (loss2, ref2)

    # 3) n % 128 != 0 -> tail-epilogue path (no jnp.pad), with bf16 inputs
    #    (native-dtype DMA, in-kernel f32 cast).
    x3 = jax.nn.sigmoid(
        jax.random.normal(k5, (3, 5, 30), dtype=jnp.float32)
    ).astype(jnp.bfloat16)
    y3 = (jax.random.uniform(k6, (3, 5, 30)) > 0.5).astype(jnp.bfloat16)
    loss3 = jax.block_until_ready(log_cosh_dice_loss(x3, y3))
    ref3 = jax.block_until_ready(_reference(x3, y3))
    assert jnp.allclose(loss3, ref3, atol=1e-4, rtol=1e-4), (loss3, ref3)

    print("KERNEL_OK")
</pallas_src>

<mosaic_0001>
module attributes {stable_mosaic.version = 11 : i64} {
  func.func @_partial_sums_kernel(%arg0: i32, %arg1: memref<8x128xf32, #tpu.memory_space<vmem>>, %arg2: memref<8x128xf32, #tpu.memory_space<vmem>>, %arg3: memref<1x2x128xf32, #tpu.memory_space<vmem>>) attributes {dimension_semantics = [#tpu.dimension_semantics<parallel>], iteration_bounds = array<i64: 2>, scalar_prefetch = 0 : i64, scratch_operands = 0 : i64, tpu.core_type = #tpu.core_type<tc>, window_params = [{transform_indices = @transform_0, window_bounds = array<i64: 8, 128>}, {transform_indices = @transform_1, window_bounds = array<i64: 8, 128>}, {transform_indices = @transform_2, window_bounds = array<i64: 1, 2, 128>}]} {
    %c0 = arith.constant 0 : index
    %c0_0 = arith.constant 0 : index
    %0 = vector.load %arg1[%c0, %c0_0] : memref<8x128xf32, #tpu.memory_space<vmem>>, vector<8x128xf32>
    %c0_1 = arith.constant 0 : index
    %c0_2 = arith.constant 0 : index
    %1 = vector.load %arg2[%c0_1, %c0_2] : memref<8x128xf32, #tpu.memory_space<vmem>>, vector<8x128xf32>
    %2 = arith.mulf %0, %1 : vector<8x128xf32>
    %cst = arith.constant dense<0.000000e+00> : vector<128xf32>
    %3 = vector.multi_reduction <add>, %2, %cst [0] : vector<8x128xf32> to vector<128xf32>
    %4 = vector.shape_cast %3 : vector<128xf32> to vector<1x128xf32>
    %c0_3 = arith.constant 0 : index
    %c0_4 = arith.constant 0 : index
    %c0_5 = arith.constant 0 : index
    %5 = vector.load %arg3[%c0_3, %c0_4, %c0_5] : memref<1x2x128xf32, #tpu.memory_space<vmem>>, vector<1x1x128xf32>
    %6 = vector.shape_cast %5 : vector<1x1x128xf32> to vector<1x128xf32>
    %7 = vector.shape_cast %4 : vector<1x128xf32> to vector<1x1x128xf32>
    tpu.vector_store %arg3[%c0_3, %c0_4, %c0_5], %7 {strides = array<i32>} : memref<1x2x128xf32, #tpu.memory_space<vmem>>, vector<1x1x128xf32>,
    %8 = arith.addf %0, %1 : vector<8x128xf32>
    %cst_6 = arith.constant dense<0.000000e+00> : vector<128xf32>
    %9 = vector.multi_reduction <add>, %8, %cst_6 [0] : vector<8x128xf32> to vector<128xf32>
    %10 = vector.shape_cast %9 : vector<128xf32> to vector<1x128xf32>
    %c0_7 = arith.constant 0 : index
    %c1 = arith.constant 1 : index
    %c0_8 = arith.constant 0 : index
    %11 = vector.load %arg3[%c0_7, %c1, %c0_8] : memref<1x2x128xf32, #tpu.memory_space<vmem>>, vector<1x1x128xf32>
    %12 = vector.shape_cast %11 : vector<1x1x128xf32> to vector<1x128xf32>
    %13 = vector.shape_cast %10 : vector<1x128xf32> to vector<1x1x128xf32>
    tpu.vector_store %arg3[%c0_7, %c1, %c0_8], %13 {strides = array<i32>} : memref<1x2x128xf32, #tpu.memory_space<vmem>>, vector<1x1x128xf32>,
    return
  }
  func.func @transform_0(%arg0: i32) -> (i32, i32) {
    %c0_i32 = arith.constant 0 : i32
    %c0_i32_0 = arith.constant 0 : i32
    return %arg0, %c0_i32 : i32, i32
  }
  func.func @transform_1(%arg0: i32) -> (i32, i32) {
    %c0_i32 = arith.constant 0 : i32
    %c0_i32_0 = arith.constant 0 : i32
    return %arg0, %c0_i32 : i32, i32
  }
  func.func @transform_2(%arg0: i32) -> (i32, i32, i32) {
    %c0_i32 = arith.constant 0 : i32
    %c0_i32_0 = arith.constant 0 : i32
    %c0_i32_1 = arith.constant 0 : i32
    return %arg0, %c0_i32, %c0_i32_0 : i32, i32, i32
  }
}

</mosaic_0001>

<llo_original>
// kernel: tpu_custom_call.1
$region0: #{tpu_custom_call.1}
  #allocation0 [shape = 'u32[]', space=smem, size = 0x4, offset = 0x4, fixed_abs, tag = 'smem constant byte address 0x4 - core index']
  #allocation1 [shape = 'u32[144,128]{1,0:T(1,128)}', space=vmem, size = 0x12000, scoped, tag = 'internal scratch']
  %s0 = inlined_call_operand.hbm [shape: f32[16,128], index: 0, kind: input, shape index: {}]
  %s1 = inlined_call_operand.hbm [shape: f32[16,128], index: 1, kind: input, shape index: {}]
  %s2 = inlined_call_operand.hbm [shape: f32[2,2,128], index: 2, kind: output, shape index: {}]
  %s3 = sld [smem:[#allocation0]]
  $region49: #{tpu_custom_call.1} parent=0
    _
  %s5 = ssub.s32 1, %s3
  %s6 = scalar_select 0, %s5, %s3
  $region1: #{tpu_custom_call.1} parent=0
    #allocation2 [shape = 'u8[8192]{0}', space=vmem, size = 0x2000, scoped, tag = 'input window, operand 0']
    #allocation3 [shape = 's32[2]{0}', space=sflag, size = 0x8, scoped, tag = 'scoped memory for tpu_custom_call.1']
    #allocation4 [shape = 's32[2]{0}', space=sflag, size = 0x8, scoped, tag = 'scoped memory for tpu_custom_call.1']
    #allocation5 [shape = 'u8[8192]{0}', space=vmem, size = 0x2000, scoped, tag = 'input window, operand 1']
    #allocation6 [shape = 's32[2]{0}', space=sflag, size = 0x8, scoped, tag = 'scoped memory for tpu_custom_call.1']
    #allocation7 [shape = 'u8[2048]{0}', space=vmem, size = 0x800, scoped, tag = 'output window, operand 0']
    %7 = vsyncpa [#allocation3], 0
    %s8 = scalar_lea.sflag [#allocation3], 1
    %9 = vsyncpa %s8, 0
    %10 = vsyncpa [#allocation6], 0
    %s11 = scalar_lea.sflag [#allocation6], 1
    %12 = vsyncpa %s11, 0
    %13 = vsyncpa [#allocation4], 0
    %s14 = scalar_lea.sflag [#allocation4], 1
    %15 = vsyncpa %s14, 0
    loop: start=0, step=1, limit=4
    $region2: #{tpu_custom_call.1} parent=1 // loop_pre_header
      _
    $region3: #{tpu_custom_call.1} parent=1 // loop_header
      %s17 = sphi 0, %s21
      %p18 = scmp.ge.s32.totalorder %s17, 4
      %s27 = sphi 0, %s29
      %s30 = sphi 0, %s27
      %s31 = sphi 0, %s30
      %s47 = sphi 0, %s31
      %s53 = sphi 0, %s55
      %s56 = sphi 0, %s53
      %s57 = sphi 0, %s56
      %s73 = sphi 0, %s57
      %s79 = sphi 0, %s81
      %s82 = sphi 0, %s79
      %s83 = sphi 0, %s82
      %s99 = sphi 0, %s83
    $region4: #{tpu_custom_call.1} parent=1 // loop_header_branch
      %20 = sbr.rel (%p18) target = $region8
    $region5: #{tpu_custom_call.1} parent=1 // loop_body
      %s22 = ssub.s32 %s17, 1
      %s23 = ssub.s32 %s17, 2
      %s24 = sadd.s32 %s17, 1
      %s25 = ssub.s32 %s17, %s24
      %p26 = scmp.eq.s32.totalorder %s25, 0
      %s28 = sadd.s32 %s27, 1
      %s29 = scalar_select %p26, %s27, %s28
      %p32 = pneg %p26
      %p33 = scmp.eq.s32.totalorder %s17, 1
      %p34 = por %p32, %p33
      %p35 = scmp.ne.s32.totalorder %s27, %s30
      %p36 = scmp.eq.s32.totalorder %s17, 0
      %p37 = por %p35, %p36
      %p38 = scmp.ne.s32.totalorder %s27, %s30
      %p39 = scmp.eq.s32.totalorder %s22, 1
      %p40 = por %p38, %p39
      %p41 = scmp.ne.s32.totalorder %s30, %s31
      %p42 = scmp.eq.s32.totalorder %s22, 0
      %p43 = por %p41, %p42
      %p44 = scmp.ne.s32.totalorder %s30, %s31
      %p45 = scmp.eq.s32.totalorder %s23, 1
      %p46 = por %p44, %p45
      %p48 = scmp.ne.s32.totalorder %s31, %s47
      %p49 = scmp.eq.s32.totalorder %s23, 0
      %p50 = por %p48, %p49
      %s51 = ssub.s32 %s17, %s24
      %p52 = scmp.eq.s32.totalorder %s51, 0
      %s54 = sadd.s32 %s53, 1
      %s55 = scalar_select %p52, %s53, %s54
      %p58 = pneg %p52
      %p59 = scmp.eq.s32.totalorder %s17, 1
      %p60 = por %p58, %p59
      %p61 = scmp.ne.s32.totalorder %s53, %s56
      %p62 = scmp.eq.s32.totalorder %s17, 0
      %p63 = por %p61, %p62
      %p64 = scmp.ne.s32.totalorder %s53, %s56
      %p65 = scmp.eq.s32.totalorder %s22, 1
      %p66 = por %p64, %p65
      %p67 = scmp.ne.s32.totalorder %s56, %s57
      %p68 = scmp.eq.s32.totalorder %s22, 0
      %p69 = por %p67, %p68
      %p70 = scmp.ne.s32.totalorder %s56, %s57
      %p71 = scmp.eq.s32.totalorder %s23, 1
      %p72 = por %p70, %p71
      %p74 = scmp.ne.s32.totalorder %s57, %s73
      %p75 = scmp.eq.s32.totalorder %s23, 0
      %p76 = por %p74, %p75
      %s77 = ssub.s32 %s17, %s24
      %p78 = scmp.eq.s32.totalorder %s77, 0
      %s80 = sadd.s32 %s79, 1
      %s81 = scalar_select %p78, %s79, %s80
      %p84 = pneg %p78
      %p85 = scmp.eq.s32.totalorder %s17, 1
      %p86 = por %p84, %p85
      %p87 = scmp.ne.s32.totalorder %s79, %s82
      %p88 = scmp.eq.s32.totalorder %s17, 0
      %p89 = por %p87, %p88
      %p90 = scmp.ne.s32.totalorder %s79, %s82
      %p91 = scmp.eq.s32.totalorder %s22, 1
      %p92 = por %p90, %p91
      %p93 = scmp.ne.s32.totalorder %s82, %s83
      %p94 = scmp.eq.s32.totalorder %s22, 0
      %p95 = por %p93, %p94
      %p96 = scmp.ne.s32.totalorder %s82, %s83
      %p97 = scmp.eq.s32.totalorder %s23, 1
      %p98 = por %p96, %p97
      %p100 = scmp.ne.s32.totalorder %s83, %s99
      %p101 = scmp.eq.s32.totalorder %s23, 0
      %p102 = por %p100, %p101
      %p103 = scmp.le.s32.totalorder 1, %s17
      %p104 = scmp.lt.s32.totalorder %s17, 3
      %p105 = pnand %p103, %p104
      %p106 = pneg %p105
      // Predicated region
      $region9: #{tpu_custom_call.1} parent=5 // pred_check
        _
      $region10: #{tpu_custom_call.1} parent=5 // pred_check_branch
        %108 = sbr.rel (%p105) target = $region12
      $region11: #{tpu_custom_call.1} parent=5 // pred_region
        %s109 = ssub.s32 %s17, 1
      $region12: #{tpu_custom_call.1} parent=5 // pred_fallthru
        _
      %p110 = scmp.lt.s32.totalorder %s17, 2
      // Predicated region
      $region13: #{tpu_custom_call.1} parent=5 // pred_check
        %p111 = pneg %p110
      $region14: #{tpu_custom_call.1} parent=5 // pred_check_branch
        %113 = sbr.rel (%p111) target = $region16
      $region15: #{tpu_custom_call.1} parent=5 // pred_region
        // Predicated region
        $region17: #{tpu_custom_call.1} parent=15 // pred_check
          %p114 = pneg %p37
        $region18: #{tpu_custom_call.1} parent=15 // pred_check_branch
          %116 = sbr.rel (%p114) target = $region20
        $region19: #{tpu_custom_call.1} parent=15 // pred_region
          %s117 = sand.u32 %s27, 1
          %s118 = scalar_lea.sflag [#allocation3], %s117
          %s119 = sand.u32 %s27, 1
          %s120 = smul.addr %s119, 8
          %s121 = scalar_lea.vmem [#allocation2], %s120
          %s123 = ssub.s32 128, 128
          %124 = vsyncadd %s118, %s123
          %s125 = smul.addr %s17, 128
          %s126 = scalar_lea.hbm %s0, %s125
          %s128 = sshll.u32 %s121, 4
          %s129 = int_to_ptr.vmem [resolvable:$true] %s128
          %131 = dma.hbm_to_vmem [thread:$0]  %s126, 128, %s129, %s118
        $region20: #{tpu_custom_call.1} parent=15 // pred_fallthru
          _
        // Predicated region
        $region21: #{tpu_custom_call.1} parent=15 // pred_check
          %p132 = pneg %p63
        $region22: #{tpu_custom_call.1} parent=15 // pred_check_branch
          %134 = sbr.rel (%p132) target = $region24
        $region23: #{tpu_custom_call.1} parent=15 // pred_region
          %s135 = sand.u32 %s53, 1
          %s136 = scalar_lea.sflag [#allocation6], %s135
          %s137 = sand.u32 %s53, 1
          %s138 = smul.addr %s137, 8
          %s139 = scalar_lea.vmem [#allocation5], %s138
          %s141 = ssub.s32 128, 128
          %142 = vsyncadd %s136, %s141
          %s143 = smul.addr %s17, 128
          %s144 = scalar_lea.hbm %s1, %s143
          %s146 = sshll.u32 %s139, 4
          %s147 = int_to_ptr.vmem [resolvable:$true] %s146
          %149 = dma.hbm_to_vmem [thread:$0]  %s144, 128, %s147, %s136
        $region24: #{tpu_custom_call.1} parent=15 // pred_fallthru
          _
      $region16: #{tpu_custom_call.1} parent=5 // pred_fallthru
        _
      %p150 = scmp.le.s32.totalorder 1, %s17
      %p151 = scmp.lt.s32.totalorder %s17, 3
      %p152 = pnand %p150, %p151
      %p153 = pneg %p152
      // Predicated region
      $region25: #{tpu_custom_call.1} parent=5 // pred_check
        _
      $region26: #{tpu_custom_call.1} parent=5 // pred_check_branch
        %155 = sbr.rel (%p152) target = $region28
      $region27: #{tpu_custom_call.1} parent=5 // pred_region
        %s156 = ssub.s32 %s17, 1
        %s157 = sand.u32 %s30, 1
        %s158 = scalar_lea.sflag [#allocation3], %s157
        %s159 = sand.u32 %s30, 1
        %s160 = smul.addr %s159, 8
        %s161 = scalar_lea.vmem [#allocation2], %s160
        // Predicated region
        $region29: #{tpu_custom_call.1} parent=27 // pred_check
          %p162 = pneg %p43
        $region30: #{tpu_custom_call.1} parent=27 // pred_check_branch
          %164 = sbr.rel (%p162) target = $region32
        $region31: #{tpu_custom_call.1} parent=27 // pred_region
          %165 = dma.done %s158, 128
        $region32: #{tpu_custom_call.1} parent=27 // pred_fallthru
          _
        %s166 = sand.u32 %s56, 1
        %s167 = scalar_lea.sflag [#allocation6], %s166
        %s168 = sand.u32 %s56, 1
        %s169 = smul.addr %s168, 8
        %s170 = scalar_lea.vmem [#allocation5], %s169
        // Predicated region
        $region33: #{tpu_custom_call.1} parent=27 // pred_check
          %p171 = pneg %p69
        $region34: #{tpu_custom_call.1} parent=27 // pred_check_branch
          %173 = sbr.rel (%p171) target = $region36
        $region35: #{tpu_custom_call.1} parent=27 // pred_region
          %174 = dma.done %s167, 128
        $region36: #{tpu_custom_call.1} parent=27 // pred_fallthru
          _
        %s175 = sand.u32 %s30, 1
        %s176 = scalar_lea.sflag [#allocation3], %s175
        %s177 = sand.u32 %s30, 1
        %s178 = smul.addr %s177, 8
        %s179 = scalar_lea.vmem [#allocation2], %s178
        %p180 = pneg %p43
        %p181 = pneg %p40
        %s182 = sand.u32 %s56, 1
        %s183 = scalar_lea.sflag [#allocation6], %s182
        %s184 = sand.u32 %s56, 1
        %s185 = smul.addr %s184, 8
        %s186 = scalar_lea.vmem [#allocation5], %s185
        %p187 = pneg %p69
        %p188 = pneg %p66
        %p189 = pneg %p95
        %p190 = pneg %p92
        %s191 = sand.u32 %s82, 1
        %s192 = scalar_lea.sflag [#allocation4], %s191
        %s193 = sand.u32 %s82, 1
        %s194 = smul.addr %s193, 2
        %s195 = scalar_lea.vmem [#allocation7], %s194
        %v196 = vld [vmem:[%s161] sm:$0xff]
        %v197 = vld [vmem:[%s170] sm:$0xff]
        %v198 = vmul.f32 %v196, %v197
        %v199 = vrot.slane %v198, 4
        %v200 = vadd.f32 %v198, %v199
        %v201 = vrot.slane %v200, 2
        %v202 = vadd.f32 %v200, %v201
        %v203 = vrot.slane %v202, 1
        %v204 = vadd.f32 %v202, %v203
        %205 = vst [vmem:[%s195] sm:$0x1] %v204
        %v206 = vadd.f32 %v196, %v197
        %v207 = vrot.slane %v206, 4
        %v208 = vadd.f32 %v206, %v207
        %v209 = vrot.slane %v208, 2
        %v210 = vadd.f32 %v208, %v209
        %v211 = vrot.slane %v210, 1
        %v212 = vadd.f32 %v210, %v211
        %213 = vst [vmem:[%s195 + $0x1] sm:$0x1] %v212
        %s214 = sand.u32 %s82, 1
        %s215 = scalar_lea.sflag [#allocation4], %s214
        %s216 = sand.u32 %s82, 1
        %s217 = smul.addr %s216, 2
        %s218 = scalar_lea.vmem [#allocation7], %s217
        // Predicated region
        $region37: #{tpu_custom_call.1} parent=27 // pred_check
          %p219 = pneg %p92
        $region38: #{tpu_custom_call.1} parent=27 // pred_check_branch
          %221 = sbr.rel (%p219) target = $region40
        $region39: #{tpu_custom_call.1} parent=27 // pred_region
          %s223 = ssub.s32 32, 32
          %224 = vsyncadd %s215, %s223
          %s225 = smul.addr %s22, 32
          %s226 = scalar_lea.hbm %s2, %s225
          %s228 = sshll.u32 %s218, 4
          %s229 = int_to_ptr.vmem [resolvable:$true] %s228
          %231 = dma.vmem_to_hbm [thread:$0]  %s229, 32, %s226, %s215
        $region40: #{tpu_custom_call.1} parent=27 // pred_fallthru
          _
      $region28: #{tpu_custom_call.1} parent=5 // pred_fallthru
        _
      %p232 = scmp.le.s32.totalorder 2, %s17
      // Predicated region
      $region41: #{tpu_custom_call.1} parent=5 // pred_check
        %p233 = pneg %p232
      $region42: #{tpu_custom_call.1} parent=5 // pred_check_branch
        %235 = sbr.rel (%p233) target = $region44
      $region43: #{tpu_custom_call.1} parent=5 // pred_region
        %s236 = ssub.s32 %s17, 2
        // Predicated region
        $region45: #{tpu_custom_call.1} parent=43 // pred_check
          %p237 = pneg %p98
        $region46: #{tpu_custom_call.1} parent=43 // pred_check_branch
          %239 = sbr.rel (%p237) target = $region48
        $region47: #{tpu_custom_call.1} parent=43 // pred_region
          %s240 = sand.u32 %s83, 1
          %s241 = scalar_lea.sflag [#allocation4], %s240
          %s242 = sand.u32 %s83, 1
          %s243 = smul.addr %s242, 2
          %s244 = scalar_lea.vmem [#allocation7], %s243
          %245 = dma.done %s241, 32
        $region48: #{tpu_custom_call.1} parent=43 // pred_fallthru
          _
      $region44: #{tpu_custom_call.1} parent=5 // pred_fallthru
        _
    $region6: #{tpu_custom_call.1} parent=1 // loop_footer
      %s21 = sadd.s32 1, %s17
    $region7: #{tpu_custom_call.1} parent=1 // loop_footer_branch
      %16 = sbr.rel target = $region3
    $region8: #{tpu_custom_call.1} parent=1 // loop_exit
      _
    %246 = vsyncpa [#allocation3], 1
    %s247 = scalar_lea.sflag [#allocation3], 1
    %248 = vsyncpa %s247, 1
    %249 = vsyncpa [#allocation6], 1
    %s250 = scalar_lea.sflag [#allocation6], 1
    %251 = vsyncpa %s250, 1
    %252 = vsyncpa [#allocation4], 1
    %s253 = scalar_lea.sflag [#allocation4], 1
    %254 = vsyncpa %s253, 1

</llo_original>
